<compile_context>
chip_gen: v5e
topology: v5e:2x2
jax: 0.10.0
libtpu: 0.0.40
codegen_flags: <defaults>
</compile_context>

<pallas_src>
import functools

import jax
import jax.numpy as jnp
from jax.experimental import pallas as pl
from jax.experimental.pallas import tpu as pltpu


# ----------------------------------------------------------------------------
# Kernels
# ----------------------------------------------------------------------------

def _single_pass_kernel(hw_true, hw_pad, x_ref, w1_ref, b1_ref, w2_ref, b2_ref,
                        o_ref):
    """One batch-block per grid step: pool + MLP + per-channel multiply."""
    x = x_ref[...]                               # (NB, C, HW_pad), input dtype
    xf = x.astype(jnp.float32)                   # f32 accumulation / math
    nb = xf.shape[0]

    # Global average pool: zero padding does not perturb the sum; divide by the
    # true HW (multiply by reciprocal constant).
    avg = jnp.sum(xf, axis=2) * jnp.float32(1.0 / hw_true)      # (NB, C)

    # Global max pool: ignore padded lanes.
    if hw_pad > hw_true:
        lane = jax.lax.broadcasted_iota(jnp.int32, (1, 1, hw_pad), 2)
        mx = jnp.max(jnp.where(lane < hw_true, xf, -jnp.inf), axis=2)
    else:
        mx = jnp.max(xf, axis=2)                                 # (NB, C)

    w1 = w1_ref[...]                              # (C, hidden)  == fc1.weight.T
    b1 = b1_ref[...]                              # (1, hidden)
    w2 = w2_ref[...]                              # (hidden, C)  == fc2.weight.T
    b2 = b2_ref[...]                              # (1, C)

    # Single stacked MLP pass for both branches (halves MXU pushes / sigmoids).
    pooled = jnp.concatenate([avg, mx], axis=0)                            # (2*NB, C)
    h = jnp.maximum(jnp.dot(pooled, w1, preferred_element_type=jnp.float32) + b1, 0.0)
    s = jax.nn.sigmoid(jnp.dot(h, w2, preferred_element_type=jnp.float32) + b2)

    scale = s[:nb] + s[nb:]                                                # (NB, C)
    # (NB, C, 1) broadcast across the lane (HW) axis -> cheap VPU broadcast.
    o_ref[...] = (xf * scale[:, :, None]).astype(o_ref.dtype)


def _pool_mlp_kernel(hw_true, hw_tile, x_ref, w1_ref, b1_ref, w2_ref, b2_ref,
                     scale_ref, sum_acc, max_acc):
    """Fallback pass 1: accumulate per-channel sum/max over HW tiles, run the MLP
    at the last tile and emit a (1, C, 1) scale per batch element."""
    t = pl.program_id(1)

    @pl.when(t == 0)
    def _init():
        sum_acc[...] = jnp.zeros_like(sum_acc)
        max_acc[...] = jnp.full_like(max_acc, -jnp.inf)

    x = x_ref[...].astype(jnp.float32)            # (1, C, hw_tile)

    # Zero padding is neutral for the sum; mask padded lanes for the max.
    lane = jax.lax.broadcasted_iota(jnp.int32, (1, 1, hw_tile), 2) + t * hw_tile
    valid = lane < hw_true
    sum_acc[...] = sum_acc[...] + jnp.sum(x, axis=2)
    max_acc[...] = jnp.maximum(max_acc[...],
                               jnp.max(jnp.where(valid, x, -jnp.inf), axis=2))

    @pl.when(t == pl.num_programs(1) - 1)
    def _finalize():
        avg = sum_acc[...] * jnp.float32(1.0 / hw_true)          # (1, C)
        mx = max_acc[...]                                        # (1, C)
        pooled = jnp.concatenate([avg, mx], axis=0)              # (2, C)
        h = jnp.maximum(
            jnp.dot(pooled, w1_ref[...], preferred_element_type=jnp.float32)
            + b1_ref[...], 0.0)
        s = jax.nn.sigmoid(
            jnp.dot(h, w2_ref[...], preferred_element_type=jnp.float32)
            + b2_ref[...])
        scale_ref[...] = (s[0:1] + s[1:2])[:, :, None]           # (1, C, 1)


def _apply_kernel(x_ref, scale_ref, o_ref):
    """Fallback pass 2: out = x * scale, tiled freely over batch and HW."""
    x = x_ref[...].astype(jnp.float32)            # (1, C, hw_tile)
    o_ref[...] = (x * scale_ref[...]).astype(o_ref.dtype)   # scale: (1, C, 1)


# ----------------------------------------------------------------------------
# Sizing helpers
# ----------------------------------------------------------------------------

def _round_up(v, m):
    return ((v + m - 1) // m) * m


def _vmem_budget():
    """Generation-aware (tensor_budget, vmem_limit_cap, desired_grid_steps)."""
    cap = 64 << 20  # conservative default: assume v7x-sized VMEM
    try:
        info = pltpu.get_tpu_info()
        cap = int(getattr(info, "vmem_capacity_bytes", cap)) or cap
    except Exception:
        pass
    if cap >= (96 << 20):
        # v5e / v6e: 128 MiB VMEM, single TensorCore -> big blocks, >=2 steps.
        return 64 << 20, 100 << 20, 2
    # v7x: 64 MiB VMEM, 2 TensorCores -> smaller blocks, >=4 steps (2 per core).
    return 24 << 20, 44 << 20, 4


def _choose_batch_block(n, bytes_per_batch, tensor_budget, desired_steps):
    """Largest batch block whose double-buffered in+out fits the budget, then
    shrunk (if possible) so the grid has >= desired_steps steps without the
    per-step slab dropping below ~1 MiB (step overhead ~0.35 us)."""
    max_nb = max(1, int(tensor_budget // (4 * bytes_per_batch)))
    nb = min(n, max_nb)
    if nb <= 1:
        return 1
    nb_for_steps = max(1, -(-n // desired_steps))          # ceil(n / steps)
    min_nb = max(1, -(-(1 << 20) // bytes_per_batch))      # >= ~1 MiB slab
    return max(1, min(nb, max(nb_for_steps, min_nb)))


# ----------------------------------------------------------------------------
# Wrapper
# ----------------------------------------------------------------------------

def cpca_channel_attention(x, fc1_w, fc1_b, fc2_w, fc2_b, *,
                           force_two_pass=False, hw_tile=None):
    """x: (N, C, H, W) float. fc1_w: (hidden, C, 1, 1, 1), fc1_b: (hidden,),
    fc2_w: (C, hidden, 1, 1, 1), fc2_b: (C,)."""
    orig_shape = x.shape
    N, C, H, W = x.shape
    hidden = fc1_w.shape[0]
    HW = H * W

    # Conv3d(k=1) weights -> dense weights (glue, plain JAX). MLP math in f32.
    w1 = fc1_w.reshape(hidden, C).T.astype(jnp.float32)   # (C, hidden)
    b1 = fc1_b.reshape(1, hidden).astype(jnp.float32)
    w2 = fc2_w.reshape(C, hidden).T.astype(jnp.float32)   # (hidden, C)
    b2 = fc2_b.reshape(1, C).astype(jnp.float32)

    tensor_budget, vmem_cap, desired_steps = _vmem_budget()

    # Lane-align the flattened spatial axis (unmasked vst, clean DMA tiles).
    hw_pad128 = max(128, _round_up(HW, 128))
    # Budget in f32-equivalent bytes (covers in-kernel f32 temps even for bf16 x).
    bytes_per_batch = C * hw_pad128 * 4

    x_flat = x.reshape(N, C, HW)
    single_pass_ok = (4 * bytes_per_batch <= tensor_budget) and not force_two_pass

    if single_pass_ok:
        # ------------------------- single-pass path -------------------------
        nb = _choose_batch_block(N, bytes_per_batch, tensor_budget, desired_steps)
        n_pad = _round_up(N, nb)
        hw_pad = hw_pad128
        xp = x_flat
        if n_pad != N or hw_pad != HW:
            xp = jnp.pad(x_flat, ((0, n_pad - N), (0, 0), (0, hw_pad - HW)))

        block_bytes = 4 * nb * C * hw_pad * 4   # double-buffered in + out, f32-equiv
        vmem_limit = int(min(max(block_bytes + (12 << 20), 16 << 20), vmem_cap))

        kernel = functools.partial(_single_pass_kernel, HW, hw_pad)
        grid_spec = pltpu.PrefetchScalarGridSpec(
            num_scalar_prefetch=0,
            grid=(n_pad // nb,),
            in_specs=[
                pl.BlockSpec((nb, C, hw_pad), lambda n: (n, 0, 0)),
                pl.BlockSpec((C, hidden), lambda n: (0, 0)),
                pl.BlockSpec((1, hidden), lambda n: (0, 0)),
                pl.BlockSpec((hidden, C), lambda n: (0, 0)),
                pl.BlockSpec((1, C), lambda n: (0, 0)),
            ],
            out_specs=pl.BlockSpec((nb, C, hw_pad), lambda n: (n, 0, 0)),
        )
        out = pl.pallas_call(
            kernel,
            out_shape=jax.ShapeDtypeStruct((n_pad, C, hw_pad), x.dtype),
            grid_spec=grid_spec,
            compiler_params=pltpu.CompilerParams(
                dimension_semantics=("parallel",),
                vmem_limit_bytes=vmem_limit,
            ),
        )(xp, w1, b1, w2, b2)
        return out[:N, :, :HW].reshape(orig_shape)

    # --------------------------- two-pass fallback ---------------------------
    # Needed when one batch slab (full C x full HW) does not fit VMEM: pool over
    # HW tiles first (1 read of x), then apply the scale (1 read + 1 write).
    if hw_tile is None:
        max_tile = max(128, (tensor_budget // (16 * C)) // 128 * 128)
        hw_tile_ = int(min(max_tile, hw_pad128))
    else:
        hw_tile_ = max(128, _round_up(int(hw_tile), 128))
    hw_pad = _round_up(HW, hw_tile_)
    hw_steps = hw_pad // hw_tile_

    xp = x_flat
    if hw_pad != HW:
        xp = jnp.pad(x_flat, ((0, 0), (0, 0), (0, hw_pad - HW)))

    tile_f32 = C * hw_tile_ * 4
    vmem_limit1 = int(min(max(2 * tile_f32 + (8 << 20), 16 << 20), vmem_cap))
    vmem_limit2 = int(min(max(4 * tile_f32 + (8 << 20), 16 << 20), vmem_cap))

    # Pass 1: pooled stats + MLP -> (N, C, 1) scale.
    pool_kernel = functools.partial(_pool_mlp_kernel, HW, hw_tile_)
    scale = pl.pallas_call(
        pool_kernel,
        out_shape=jax.ShapeDtypeStruct((N, C, 1), jnp.float32),
        grid_spec=pltpu.PrefetchScalarGridSpec(
            num_scalar_prefetch=0,
            grid=(N, hw_steps),
            in_specs=[
                pl.BlockSpec((1, C, hw_tile_), lambda n, t: (n, 0, t)),
                pl.BlockSpec((C, hidden), lambda n, t: (0, 0)),
                pl.BlockSpec((1, hidden), lambda n, t: (0, 0)),
                pl.BlockSpec((hidden, C), lambda n, t: (0, 0)),
                pl.BlockSpec((1, C), lambda n, t: (0, 0)),
            ],
            out_specs=pl.BlockSpec((1, C, 1), lambda n, t: (n, 0, 0)),
            scratch_shapes=[pltpu.VMEM((1, C), jnp.float32),
                            pltpu.VMEM((1, C), jnp.float32)],
        ),
        compiler_params=pltpu.CompilerParams(
            dimension_semantics=("parallel", "arbitrary"),
            vmem_limit_bytes=vmem_limit1,
        ),
    )(xp, w1, b1, w2, b2)

    # Pass 2: out = x * scale, freely tiled.
    out = pl.pallas_call(
        _apply_kernel,
        out_shape=jax.ShapeDtypeStruct((N, C, hw_pad), x.dtype),
        grid_spec=pltpu.PrefetchScalarGridSpec(
            num_scalar_prefetch=0,
            grid=(N, hw_steps),
            in_specs=[
                pl.BlockSpec((1, C, hw_tile_), lambda n, t: (n, 0, t)),
                pl.BlockSpec((1, C, 1), lambda n, t: (n, 0, 0)),
            ],
            out_specs=pl.BlockSpec((1, C, hw_tile_), lambda n, t: (n, 0, t)),
        ),
        compiler_params=pltpu.CompilerParams(
            dimension_semantics=("parallel", "parallel"),
            vmem_limit_bytes=vmem_limit2,
        ),
    )(xp, scale)
    return out[:, :, :HW].reshape(orig_shape)


# ----------------------------------------------------------------------------
# Pure-JAX reference of the module's (intended) forward
# ----------------------------------------------------------------------------

def _reference(x, fc1_w, fc1_b, fc2_w, fc2_b):
    N, C, H, W = x.shape
    hidden = fc1_w.shape[0]
    xf = x.astype(jnp.float32)
    w1 = fc1_w.reshape(hidden, C).astype(jnp.float32)
    w2 = fc2_w.reshape(C, hidden).astype(jnp.float32)

    def mlp(v):  # (N, C) -> (N, C)
        h = jnp.maximum(v @ w1.T + fc1_b.astype(jnp.float32), 0.0)
        return jax.nn.sigmoid(h @ w2.T + fc2_b.astype(jnp.float32))

    s = mlp(xf.mean(axis=(2, 3))) + mlp(xf.max(axis=(2, 3)))
    return xf * s[:, :, None, None]


if __name__ == "__main__":
    C, hidden = 16, 8
    key = jax.random.PRNGKey(0)
    kp, kx1, kx2, kx3 = jax.random.split(key, 4)
    k1w, k1b, k2w, k2b = jax.random.split(kp, 4)

    fc1_w = jax.random.normal(k1w, (hidden, C, 1, 1, 1), jnp.float32) * 0.1
    fc1_b = jax.random.normal(k1b, (hidden,), jnp.float32) * 0.1
    fc2_w = jax.random.normal(k2w, (C, hidden, 1, 1, 1), jnp.float32) * 0.1
    fc2_b = jax.random.normal(k2b, (C,), jnp.float32) * 0.1
    params = (fc1_w, fc1_b, fc2_w, fc2_b)

    # 1) Single-pass path, lane-aligned HW, divisor batch.
    x1 = jax.random.normal(kx1, (2, C, 16, 16), jnp.float32)
    o1 = jax.block_until_ready(cpca_channel_attention(x1, *params))
    r1 = _reference(x1, *params)
    assert o1.shape == x1.shape and o1.dtype == x1.dtype
    assert jnp.allclose(o1, r1, atol=1e-5, rtol=1e-5), "single-pass mismatch"

    # 2) Non-divisor batch + HW < 128 (exercises batch padding + lane masking).
    x2 = jax.random.normal(kx2, (3, C, 10, 10), jnp.float32)
    o2 = jax.block_until_ready(cpca_channel_attention(x2, *params))
    r2 = _reference(x2, *params)
    assert jnp.allclose(o2, r2, atol=1e-5, rtol=1e-5), "padded-shape mismatch"

    # 3) Forced two-pass fallback with multiple HW tiles and a padded tail tile.
    x3 = jax.random.normal(kx3, (2, C, 16, 18), jnp.float32)
    o3 = jax.block_until_ready(
        cpca_channel_attention(x3, *params, force_two_pass=True, hw_tile=128))
    r3 = _reference(x3, *params)
    assert jnp.allclose(o3, r3, atol=1e-5, rtol=1e-5), "two-pass mismatch"

    # 4) bf16 HBM path (halves memory traffic; math stays f32 inside the kernel).
    xb = x1.astype(jnp.bfloat16)
    ob = jax.block_until_ready(cpca_channel_attention(xb, *params))
    rb = _reference(xb.astype(jnp.float32), *params).astype(jnp.bfloat16)
    assert ob.dtype == jnp.bfloat16
    assert jnp.allclose(ob.astype(jnp.float32), rb.astype(jnp.float32),
                        atol=5e-2, rtol=5e-2), "bf16 mismatch"

    print("KERNEL_OK")
</pallas_src>

<mosaic_0001>
module attributes {stable_mosaic.version = 11 : i64} {
  func.func @_single_pass_kernel(%arg0: i32, %arg1: memref<2x16x256xf32, #tpu.memory_space<vmem>>, %arg2: memref<16x8xf32, #tpu.memory_space<vmem>>, %arg3: memref<1x8xf32, #tpu.memory_space<vmem>>, %arg4: memref<8x16xf32, #tpu.memory_space<vmem>>, %arg5: memref<1x16xf32, #tpu.memory_space<vmem>>, %arg6: memref<2x16x256xf32, #tpu.memory_space<vmem>>) attributes {dimension_semantics = [#tpu.dimension_semantics<parallel>], iteration_bounds = array<i64: 1>, scalar_prefetch = 0 : i64, scratch_operands = 0 : i64, tpu.core_type = #tpu.core_type<tc>, window_params = [{transform_indices = @transform_0, window_bounds = array<i64: 2, 16, 256>}, {pipeline_mode = #tpu.pipeline_mode<synchronous>, transform_indices = @transform_1, window_bounds = array<i64: 16, 8>}, {pipeline_mode = #tpu.pipeline_mode<synchronous>, transform_indices = @transform_2, window_bounds = array<i64: 1, 8>}, {pipeline_mode = #tpu.pipeline_mode<synchronous>, transform_indices = @transform_3, window_bounds = array<i64: 8, 16>}, {pipeline_mode = #tpu.pipeline_mode<synchronous>, transform_indices = @transform_4, window_bounds = array<i64: 1, 16>}, {transform_indices = @transform_5, window_bounds = array<i64: 2, 16, 256>}]} {
    %c0 = arith.constant 0 : index
    %c0_0 = arith.constant 0 : index
    %c0_1 = arith.constant 0 : index
    %0 = vector.load %arg1[%c0, %c0_0, %c0_1] : memref<2x16x256xf32, #tpu.memory_space<vmem>>, vector<2x16x256xf32>
    %cst = arith.constant dense<0.000000e+00> : vector<2x16xf32>
    %1 = vector.multi_reduction <add>, %0, %cst [2] : vector<2x16x256xf32> to vector<2x16xf32>
    %cst_2 = arith.constant 3.906250e-03 : f32
    %2 = vector.broadcast %cst_2 : f32 to vector<2x16xf32>
    %3 = arith.mulf %1, %2 : vector<2x16xf32>
    %cst_3 = arith.constant dense<0xFF800000> : vector<2x16xf32>
    %4 = vector.multi_reduction <maximumf>, %0, %cst_3 [2] : vector<2x16x256xf32> to vector<2x16xf32>
    %c0_4 = arith.constant 0 : index
    %c0_5 = arith.constant 0 : index
    %5 = vector.load %arg2[%c0_4, %c0_5] : memref<16x8xf32, #tpu.memory_space<vmem>>, vector<16x8xf32>
    %c0_6 = arith.constant 0 : index
    %c0_7 = arith.constant 0 : index
    %6 = vector.load %arg3[%c0_6, %c0_7] : memref<1x8xf32, #tpu.memory_space<vmem>>, vector<1x8xf32>
    %c0_8 = arith.constant 0 : index
    %c0_9 = arith.constant 0 : index
    %7 = vector.load %arg4[%c0_8, %c0_9] : memref<8x16xf32, #tpu.memory_space<vmem>>, vector<8x16xf32>
    %c0_10 = arith.constant 0 : index
    %c0_11 = arith.constant 0 : index
    %8 = vector.load %arg5[%c0_10, %c0_11] : memref<1x16xf32, #tpu.memory_space<vmem>>, vector<1x16xf32>
    %9 = tpu.concatenate %3, %4 in 0 : vector<2x16xf32>, vector<2x16xf32> -> vector<4x16xf32>
    %cst_12 = arith.constant dense<0.000000e+00> : vector<4x8xf32>
    %10 = tpu.matmul %9, %5, %cst_12 {dimension_numbers = #tpu.dot_dimension_numbers<[1], [0], [0], [1], [0, 0, 1, 1], [], []>} : vector<4x16xf32>, vector<16x8xf32>, vector<4x8xf32> -> vector<4x8xf32>
    %11 = vector.broadcast %6 : vector<1x8xf32> to vector<4x8xf32>
    %12 = arith.addf %10, %11 : vector<4x8xf32>
    %cst_13 = arith.constant 0.000000e+00 : f32
    %13 = vector.broadcast %cst_13 : f32 to vector<4x8xf32>
    %14 = arith.maximumf %12, %13 : vector<4x8xf32>
    %cst_14 = arith.constant dense<0.000000e+00> : vector<4x16xf32>
    %15 = tpu.matmul %14, %7, %cst_14 {dimension_numbers = #tpu.dot_dimension_numbers<[1], [0], [0], [1], [0, 0, 1, 1], [], []>} : vector<4x8xf32>, vector<8x16xf32>, vector<4x16xf32> -> vector<4x16xf32>
    %16 = vector.broadcast %8 : vector<1x16xf32> to vector<4x16xf32>
    %17 = arith.addf %15, %16 : vector<4x16xf32>
    %18 = arith.negf %17 : vector<4x16xf32>
    %19 = math.exp %18 : vector<4x16xf32>
    %cst_15 = arith.constant 1.000000e+00 : f32
    %20 = vector.broadcast %cst_15 : f32 to vector<4x16xf32>
    %21 = arith.addf %20, %19 : vector<4x16xf32>
    %22 = arith.divf %20, %21 : vector<4x16xf32>
    %23 = vector.extract_strided_slice %22 {offsets = [0, 0], sizes = [2, 16], strides = [1, 1]} : vector<4x16xf32> to vector<2x16xf32>
    %24 = vector.extract_strided_slice %22 {offsets = [2, 0], sizes = [2, 16], strides = [1, 1]} : vector<4x16xf32> to vector<2x16xf32>
    %25 = arith.addf %23, %24 : vector<2x16xf32>
    %26 = vector.shape_cast %25 : vector<2x16xf32> to vector<2x16x1xf32>
    %27 = vector.broadcast %26 : vector<2x16x1xf32> to vector<2x16x256xf32>
    %28 = arith.mulf %0, %27 : vector<2x16x256xf32>
    %c0_16 = arith.constant 0 : index
    %c0_17 = arith.constant 0 : index
    %c0_18 = arith.constant 0 : index
    %29 = vector.load %arg6[%c0_16, %c0_17, %c0_18] : memref<2x16x256xf32, #tpu.memory_space<vmem>>, vector<2x16x256xf32>
    tpu.vector_store %arg6[%c0_16, %c0_17, %c0_18], %28 {strides = array<i32>} : memref<2x16x256xf32, #tpu.memory_space<vmem>>, vector<2x16x256xf32>,
    return
  }
  func.func @transform_0(%arg0: i32) -> (i32, i32, i32) {
    %c0_i32 = arith.constant 0 : i32
    %c0_i32_0 = arith.constant 0 : i32
    %c0_i32_1 = arith.constant 0 : i32
    return %arg0, %c0_i32, %c0_i32_0 : i32, i32, i32
  }
  func.func @transform_1(%arg0: i32) -> (i32, i32) {
    %c0_i32 = arith.constant 0 : i32
    %c0_i32_0 = arith.constant 0 : i32
    %c0_i32_1 = arith.constant 0 : i32
    return %c0_i32, %c0_i32_0 : i32, i32
  }
  func.func @transform_2(%arg0: i32) -> (i32, i32) {
    %c0_i32 = arith.constant 0 : i32
    %c0_i32_0 = arith.constant 0 : i32
    %c0_i32_1 = arith.constant 0 : i32
    return %c0_i32, %c0_i32_0 : i32, i32
  }
  func.func @transform_3(%arg0: i32) -> (i32, i32) {
    %c0_i32 = arith.constant 0 : i32
    %c0_i32_0 = arith.constant 0 : i32
    %c0_i32_1 = arith.constant 0 : i32
    return %c0_i32, %c0_i32_0 : i32, i32
  }
  func.func @transform_4(%arg0: i32) -> (i32, i32) {
    %c0_i32 = arith.constant 0 : i32
    %c0_i32_0 = arith.constant 0 : i32
    %c0_i32_1 = arith.constant 0 : i32
    return %c0_i32, %c0_i32_0 : i32, i32
  }
  func.func @transform_5(%arg0: i32) -> (i32, i32, i32) {
    %c0_i32 = arith.constant 0 : i32
    %c0_i32_0 = arith.constant 0 : i32
    %c0_i32_1 = arith.constant 0 : i32
    return %arg0, %c0_i32, %c0_i32_0 : i32, i32, i32
  }
}

</mosaic_0001>

<llo_original>
// kernel: tpu_custom_call.1
$region0: #{tpu_custom_call.1}
  #allocation0 [shape = 'u32[]', space=smem, size = 0x4, offset = 0x4, fixed_abs, tag = 'smem constant byte address 0x4 - core index']
  #allocation1 [shape = 'u32[72,128]{1,0:T(1,128)}', space=vmem, size = 0x9000, scoped, tag = 'internal scratch']
  %s0 = inlined_call_operand.hbm [shape: f32[2,16,256], index: 0, kind: input, shape index: {}]
  %s1 = inlined_call_operand.vmem [shape: f32[16,8], index: 1, kind: input, shape index: {}]
  %s2 = inlined_call_operand.vmem [shape: f32[1,8], index: 2, kind: input, shape index: {}]
  %s3 = inlined_call_operand.vmem [shape: f32[8,16], index: 3, kind: input, shape index: {}]
  %s4 = inlined_call_operand.vmem [shape: f32[1,16], index: 4, kind: input, shape index: {}]
  %s5 = inlined_call_operand.hbm [shape: f32[2,16,256], index: 5, kind: output, shape index: {}]
  %s6 = sld [smem:[#allocation0]]
  $region34: #{tpu_custom_call.1} parent=0
    _
  %s8 = ssub.s32 1, %s6
  %s9 = scalar_select 0, %s8, %s6
  $region1: #{tpu_custom_call.1} parent=0
    #allocation2 [shape = 'u8[32768]{0}', space=vmem, size = 0x8000, scoped, tag = 'input window, operand 0, single buffered']
    #allocation3 [shape = 's32[1]{0}', space=sflag, size = 0x4, scoped, tag = 'scoped memory for tpu_custom_call.1']
    #allocation4 [shape = 's32[1]{0}', space=sflag, size = 0x4, scoped, tag = 'scoped memory for tpu_custom_call.1']
    #allocation5 [shape = 'u8[32768]{0}', space=vmem, size = 0x8000, scoped, tag = 'output window, operand 0, single buffered']
    %10 = vsyncpa [#allocation3], 0
    %11 = vsyncpa [#allocation4], 0
    // Predicated region
    $region2: #{tpu_custom_call.1} parent=1 // pred_check
      _
    $region3: #{tpu_custom_call.1} parent=1 // pred_check_branch
      %13 = sbr.rel (0) target = $region5
    $region4: #{tpu_custom_call.1} parent=1 // pred_region
      %15 = vsyncadd [#allocation3], 0
      %s16 = sshll.u32 %s0, 4
      %s17 = int_to_ptr.hbm [resolvable:$true] %s16
      %s18 = sshll.u32 [#allocation2], 4
      %s19 = int_to_ptr.vmem [resolvable:$true] %s18
      %24 = dma.hbm_to_vmem [thread:$0]  %s17, 1024, %s19, [#allocation3], 256, 256, 16
    $region5: #{tpu_custom_call.1} parent=1 // pred_fallthru
      _
    // Predicated region
    $region6: #{tpu_custom_call.1} parent=1 // pred_check
      _
    $region7: #{tpu_custom_call.1} parent=1 // pred_check_branch
      %26 = sbr.rel (0) target = $region9
    $region8: #{tpu_custom_call.1} parent=1 // pred_region
      _
    $region9: #{tpu_custom_call.1} parent=1 // pred_fallthru
      _
    // Predicated region
    $region10: #{tpu_custom_call.1} parent=1 // pred_check
      _
    $region11: #{tpu_custom_call.1} parent=1 // pred_check_branch
      %28 = sbr.rel (0) target = $region13
    $region12: #{tpu_custom_call.1} parent=1 // pred_region
      _
    $region13: #{tpu_custom_call.1} parent=1 // pred_fallthru
      _
    // Predicated region
    $region14: #{tpu_custom_call.1} parent=1 // pred_check
      _
    $region15: #{tpu_custom_call.1} parent=1 // pred_check_branch
      %30 = sbr.rel (0) target = $region17
    $region16: #{tpu_custom_call.1} parent=1 // pred_region
      _
    $region17: #{tpu_custom_call.1} parent=1 // pred_fallthru
      _
    // Predicated region
    $region18: #{tpu_custom_call.1} parent=1 // pred_check
      _
    $region19: #{tpu_custom_call.1} parent=1 // pred_check_branch
      %32 = sbr.rel (0) target = $region21
    $region20: #{tpu_custom_call.1} parent=1 // pred_region
      _
    $region21: #{tpu_custom_call.1} parent=1 // pred_fallthru
      _
    // Predicated region
    $region22: #{tpu_custom_call.1} parent=1 // pred_check
      _
    $region23: #{tpu_custom_call.1} parent=1 // pred_check_branch
      %34 = sbr.rel (0) target = $region25
    $region24: #{tpu_custom_call.1} parent=1 // pred_region
      %36 = dma.done [#allocation3], 1024
    $region25: #{tpu_custom_call.1} parent=1 // pred_fallthru
      _
    %v37 = vld [vmem:[#allocation2] sm:$0xff]
    %v38 = vld [vmem:[#allocation2 + $0x8] sm:$0xff]
    %v39 = vld [vmem:[#allocation2 + $0x10] sm:$0xff]
    %v40 = vld [vmem:[#allocation2 + $0x18] sm:$0xff]
    %v41 = vld [vmem:[#allocation2 + $0x20] sm:$0xff]
    %v42 = vld [vmem:[#allocation2 + $0x28] sm:$0xff]
    %v43 = vld [vmem:[#allocation2 + $0x30] sm:$0xff]
    %v44 = vld [vmem:[#allocation2 + $0x38] sm:$0xff]
    %v45 = vadd.f32 %v37, %v38
    %46 = vadd.xlane.f32.xlu0 %v45
    %v47 = vpop.xlane.xlu0 %46
    %v48 = vadd.f32 %v39, %v40
    %49 = vadd.xlane.f32.xlu0 %v48
    %v50 = vpop.xlane.xlu0 %49
    %v51 = vadd.f32 %v41, %v42
    %52 = vadd.xlane.f32.xlu0 %v51
    %v53 = vpop.xlane.xlu0 %52
    %v54 = vadd.f32 %v43, %v44
    %55 = vadd.xlane.f32.xlu0 %v54
    %v56 = vpop.xlane.xlu0 %55
    %v57 = vmul.f32 %v47, 0.00390625
    %v58 = vmul.f32 %v50, 0.00390625
    %v59 = vmul.f32 %v53, 0.00390625
    %v60 = vmul.f32 %v56, 0.00390625
    %v61 = vmax.f32 %v37, %v38
    %62 = vmax.xlane.f32.xlu0 %v61
    %v63 = vpop.xlane.xlu0 %62
    %v64 = vmax.f32 %v39, %v40
    %65 = vmax.xlane.f32.xlu0 %v64
    %v66 = vpop.xlane.xlu0 %65
    %v67 = vmax.f32 %v41, %v42
    %68 = vmax.xlane.f32.xlu0 %v67
    %v69 = vpop.xlane.xlu0 %68
    %v70 = vmax.f32 %v43, %v44
    %71 = vmax.xlane.f32.xlu0 %v70
    %v72 = vpop.xlane.xlu0 %71
    %v73 = vld [vmem:[%s1] sm:$0xff]
    %v74 = vld [vmem:[%s1 + $0x8] sm:$0xff]
    %v75 = vld [vmem:[%s2] sm:$0x1]
    %v76 = vld [vmem:[%s3] sm:$0xff]
    %v77 = vld [vmem:[%s4] sm:$0x1]
    %v82 = vlaneseq
    %v83 = vand.u32 %v82, 127
    %v84 = vperm.slane %v57, %v83
    %v85 = vadd.s32 %v83, 4294967288
    %v86 = vperm.slane %v58, %v85
    %vm87 = vcmask 130112
    %v88 = vsel %vm87, %v86, %v84
    %v89 = vperm.slane %v59, %v83
    %v90 = vperm.slane %v60, %v85
    %v91 = vsel %vm87, %v90, %v89
    %vm92 = vcmask 1041409
    %v93 = vsel %vm92, %v91, %v88
    %v99 = vperm.slane %v63, %v83
    %v100 = vperm.slane %v66, %v85
    %v101 = vsel %vm87, %v100, %v99
    %v102 = vperm.slane %v69, %v83
    %v103 = vperm.slane %v72, %v85
    %v104 = vsel %vm87, %v103, %v102
    %vm105 = vcmask 1043459
    %v106 = vsel %vm105, %v104, %v101
    %vm108 = vcmask 1041408
    %v109 = vsel %vm108, %v93, %v106
    %v111 = vperm.slane %v75, 0
    %vm113 = vcmask 130048
    %v115 = vsel %vm113, %v109, 0
    %117 = vmatpush.msra.mxu0 0.0
    %118 = vmatpush.msra.mxu0 0.0
    %119 = vmatpush.msra.mxu0 0.0
    %120 = vmatpush.msra.mxu0 0.0
    %121 = vmatpush.msra.mxu0 0.0
    %122 = vmatpush.msra.mxu0 0.0
    %123 = vmatpush.msra.mxu0 0.0
    %124 = vmatpush.msra.mxu0 0.0
    %125 = vmatpush.msra.mxu0 0.0
    %126 = vmatpush.msra.mxu0 0.0
    %127 = vmatpush.msra.mxu0 0.0
    %128 = vmatpush.msra.mxu0 0.0
    %129 = vmatpush.msra.mxu0 0.0
    %130 = vmatpush.msra.mxu0 0.0
    %131 = vmatpush.msra.mxu0 %v74
    %132 = vmatpush.msra.mxu0 %v73
    %133 = vmatmul.f32.gmra.mxu0 %v115
    %v134 = vpop.f32.mrf.mxu0
    %v135 = vadd.f32 %v111, %v134
    %136 = vdwg.mxu0
    %v137 = vmax.f32 %v135, 0.0
    %v139 = vperm.slane %v77, 0
    %vm141 = vcmask 64512
    %v143 = vsel %vm141, %v137, 0
    %145 = vmatpush.msra.mxu0 0.0
    %146 = vmatpush.msra.mxu0 0.0
    %147 = vmatpush.msra.mxu0 0.0
    %148 = vmatpush.msra.mxu0 0.0
    %149 = vmatpush.msra.mxu0 0.0
    %150 = vmatpush.msra.mxu0 0.0
    %151 = vmatpush.msra.mxu0 0.0
    %152 = vmatpush.msra.mxu0 0.0
    %153 = vmatpush.msra.mxu0 0.0
    %154 = vmatpush.msra.mxu0 0.0
    %155 = vmatpush.msra.mxu0 0.0
    %156 = vmatpush.msra.mxu0 0.0
    %157 = vmatpush.msra.mxu0 0.0
    %158 = vmatpush.msra.mxu0 0.0
    %159 = vmatpush.msra.mxu0 0.0
    %160 = vmatpush.msra.mxu0 %v76
    %161 = vmatmul.f32.gmra.mxu0 %v143
    %v162 = vpop.f32.mrf.mxu0
    %v163 = vadd.f32 %v139, %v162
    %164 = vdwg.mxu0
    %v165 = vxor.u32 %v163, 2147483648
    %v166 = vmul.f32 %v165, 1.442695
    %v167 = vpow.pop %v166
    %v168 = vadd.f32 %v167, 1.0
    %v169 = vrcp.pop %v168
    %v170 = vmul.f32 %v168, %v169
    %v171 = vsub.f32 1.0, %v170
    %v172 = vmul.f32 %v169, %v171
    %v173 = vadd.f32 %v169, %v172
    %vm174 = vweird.f32 %v168
    %vm175 = vweird.f32 %v169
    %vm176 = vmor %vm174, %vm175
    %v177 = vsel %vm176, %v169, %v173
    %v178 = vand.u32 2147483647, %v168
    %vm179 = vcmp.eq.f32.partialorder %v178, 8.507059e+37
    %v180 = vand.u32 %v168, 2147483648
    %v181 = vor.u32 1.1754944e-38, %v180
    %v182 = vsel %vm179, %v181, %v177
    %v183 = vmul.f32 1.0, %v182
    %v185 = vrot.slane %v183, 2
    %v187 = vadd.f32 %v183, %v185
    %v188 = vperm.slane %v187, 0
    %v189 = vlaneseq
    %v190 = vshrl.u32 %v189, 7
    %192 = vset.pattern.permute.xlu0 %v190
    %193 = vperm.xlu0 %192, %v188
    %v194 = vpop.permute.xlu0 %193
    %v195 = vlaneseq
    %v196 = vshrl.u32 %v195, 7
    %v197 = vadd.s32 %v196, 8
    %198 = vset.pattern.permute.xlu0 %v197
    %199 = vperm.xlu0 %198, %v188
    %v200 = vpop.permute.xlu0 %199
    %v201 = vperm.slane %v187, 1
    %v202 = vlaneseq
    %v203 = vshrl.u32 %v202, 7
    %205 = vset.pattern.permute.xlu0 %v203
    %206 = vperm.xlu0 %205, %v201
    %v207 = vpop.permute.xlu0 %206
    %v208 = vlaneseq
    %v209 = vshrl.u32 %v208, 7
    %v210 = vadd.s32 %v209, 8
    %211 = vset.pattern.permute.xlu0 %v210
    %212 = vperm.xlu0 %211, %v201
    %v213 = vpop.permute.xlu0 %212
    %v214 = vmul.f32 %v37, %v194
    %v215 = vmul.f32 %v38, %v194
    %v216 = vmul.f32 %v39, %v200
    %v217 = vmul.f32 %v40, %v200
    %v218 = vmul.f32 %v41, %v207
    %v219 = vmul.f32 %v42, %v207
    %v220 = vmul.f32 %v43, %v213
    %v221 = vmul.f32 %v44, %v213
    %222 = vst [vmem:[#allocation5] sm:$0xff] %v214
    %223 = vst [vmem:[#allocation5 + $0x8] sm:$0xff] %v215
    %224 = vst [vmem:[#allocation5 + $0x10] sm:$0xff] %v216
    %225 = vst [vmem:[#allocation5 + $0x18] sm:$0xff] %v217
    %226 = vst [vmem:[#allocation5 + $0x20] sm:$0xff] %v218
    %227 = vst [vmem:[#allocation5 + $0x28] sm:$0xff] %v219
    %228 = vst [vmem:[#allocation5 + $0x30] sm:$0xff] %v220
    %229 = vst [vmem:[#allocation5 + $0x38] sm:$0xff] %v221
    // Predicated region
    $region26: #{tpu_custom_call.1} parent=1 // pred_check
      _
    $region27: #{tpu_custom_call.1} parent=1 // pred_check_branch
      %231 = sbr.rel (0) target = $region29
    $region28: #{tpu_custom_call.1} parent=1 // pred_region
      %233 = vsyncadd [#allocation4], 0
      %s234 = sshll.u32 [#allocation5], 4
      %s235 = int_to_ptr.vmem [resolvable:$true] %s234
      %s236 = sshll.u32 %s5, 4
      %s237 = int_to_ptr.hbm [resolvable:$true] %s236
      %242 = dma.vmem_to_hbm [thread:$0]  %s235, 1024, %s237, [#allocation4], 256, 256, 16
    $region29: #{tpu_custom_call.1} parent=1 // pred_fallthru
      _
    // Predicated region
    $region30: #{tpu_custom_call.1} parent=1 // pred_check
      _
    $region31: #{tpu_custom_call.1} parent=1 // pred_check_branch
      %244 = sbr.rel (0) target = $region33
    $region32: #{tpu_custom_call.1} parent=1 // pred_region
      %246 = dma.done [#allocation4], 1024
    $region33: #{tpu_custom_call.1} parent=1 // pred_fallthru
      _
    %247 = vsyncpa [#allocation3], 1
    %248 = vsyncpa [#allocation4], 1

</llo_original>
